<compile_context>
chip_gen: v5e
topology: v5e:2x2
jax: 0.10.0
libtpu: 0.0.40
codegen_flags: <defaults>
</compile_context>

<pallas_src>
import jax
import jax.numpy as jnp
from jax.experimental import pallas as pl
from jax.experimental.pallas import tpu as pltpu


def _actor_kernel(state_ref, w1_ref, b1_ref, w2_ref, b2_ref, w3_ref, b3_ref,
                  mu_ref):
    # fc1 + relu
    x = jnp.dot(state_ref[...], w1_ref[...], preferred_element_type=jnp.float32)
    x = jnp.maximum(x + b1_ref[...], 0.0)
    # fc2 + relu
    x = jnp.dot(x, w2_ref[...], preferred_element_type=jnp.float32)
    x = jnp.maximum(x + b2_ref[...], 0.0)
    # pi + tanh
    x = jnp.dot(x, w3_ref[...], preferred_element_type=jnp.float32)
    mu_ref[...] = jnp.tanh(x + b3_ref[...]).astype(mu_ref.dtype)


def _round_up(x, m):
    return ((x + m - 1) // m) * m


# Batch-tile cap: 2048 rows of f32 activations (16+64+32+4 features, double
# buffered on the streamed operands) is well under 2 MiB of VMEM — safe on
# v5e (128 MiB), v6e (128 MiB), and v7x (64 MiB physical / 32 MiB scoped).
_MAX_TM = 2048


@jax.jit
def actor_forward(state, w1, b1, w2, b2, w3, b3):
    batch, input_dims = state.shape
    action_dim = w3.shape[1]

    # Batch tile: multiple of 8 (sublane), capped at _MAX_TM.
    tm = min(_round_up(batch, 8), _MAX_TM)
    padded = _round_up(batch, tm)
    if padded != batch:
        state = jnp.pad(state, ((0, padded - batch), (0, 0)))

    grid = (padded // tm,)

    # Weights/biases: full-array blocks with constant index maps → DMA'd once,
    # VMEM-resident across every batch tile.
    def resident(shape):
        return pl.BlockSpec(shape, lambda i, _s=shape: (0,) * len(_s))

    mu = pl.pallas_call(
        _actor_kernel,
        out_shape=jax.ShapeDtypeStruct((padded, action_dim), jnp.float32),
        grid=grid,
        in_specs=[
            pl.BlockSpec((tm, input_dims), lambda i: (i, 0)),  # streamed state
            resident(w1.shape), resident(b1.shape),
            resident(w2.shape), resident(b2.shape),
            resident(w3.shape), resident(b3.shape),
        ],
        out_specs=pl.BlockSpec((tm, action_dim), lambda i: (i, 0)),
        compiler_params=pltpu.CompilerParams(
            dimension_semantics=("parallel",),   # v7x: shard batch over 2 TCs
            vmem_limit_bytes=32 * 1024 * 1024,
        ),
    )(state, w1, b1, w2, b2, w3, b3)

    return mu[:batch]


def init_linear_params(key, fan_in, fan_out):
    """Deterministic init mimicking PyTorch nn.Linear: U(-1/sqrt(fan_in), 1/sqrt(fan_in)).

    Weight returned as (fan_in, fan_out) so the kernel can do x @ W directly.
    """
    kw, kb = jax.random.split(key)
    bound = 1.0 / jnp.sqrt(jnp.float32(fan_in))
    w = jax.random.uniform(kw, (fan_in, fan_out), jnp.float32, -bound, bound)
    b = jax.random.uniform(kb, (1, fan_out), jnp.float32, -bound, bound)
    return w, b


def reference_forward(state, w1, b1, w2, b2, w3, b3):
    x = jnp.maximum(state @ w1 + b1, 0.0)
    x = jnp.maximum(x @ w2 + b2, 0.0)
    return jnp.tanh(x @ w3 + b3)


if __name__ == "__main__":
    # Small shapes consistent with the Actor module's forward pass.
    input_dims = 16
    fc1_dims = 64
    fc2_dims = 32
    action_dim = 4

    key = jax.random.PRNGKey(0)
    k_state, k1, k2, k3, k_big = jax.random.split(key, 5)

    w1, b1 = init_linear_params(k1, input_dims, fc1_dims)
    w2, b2 = init_linear_params(k2, fc1_dims, fc2_dims)
    w3, b3 = init_linear_params(k3, fc2_dims, action_dim)

    # Case 1: small batch (single grid step).
    batch = 8
    state = jax.random.normal(k_state, (batch, input_dims), jnp.float32)
    mu = jax.block_until_ready(actor_forward(state, w1, b1, w2, b2, w3, b3))
    mu_ref = reference_forward(state, w1, b1, w2, b2, w3, b3)
    assert mu.shape == (batch, action_dim)
    assert jnp.allclose(mu, mu_ref, atol=1e-5, rtol=1e-5), "mismatch (batch=8)"

    # Case 2: larger, non-multiple-of-8 batch exercising padding + multi-step
    # parallel grid (weights stay VMEM-resident across tiles).
    big_batch = 300
    state_big = jax.random.normal(k_big, (big_batch, input_dims), jnp.float32)
    mu_big = jax.block_until_ready(
        actor_forward(state_big, w1, b1, w2, b2, w3, b3))
    mu_big_ref = reference_forward(state_big, w1, b1, w2, b2, w3, b3)
    assert mu_big.shape == (big_batch, action_dim)
    assert jnp.allclose(mu_big, mu_big_ref, atol=1e-5, rtol=1e-5), \
        "mismatch (batch=300)"

    print("KERNEL_OK")
</pallas_src>

<mosaic_0001>
module attributes {stable_mosaic.version = 11 : i64} {
  func.func @_actor_kernel(%arg0: i32, %arg1: memref<8x16xf32, #tpu.memory_space<vmem>>, %arg2: memref<16x64xf32, #tpu.memory_space<vmem>>, %arg3: memref<1x64xf32, #tpu.memory_space<vmem>>, %arg4: memref<64x32xf32, #tpu.memory_space<vmem>>, %arg5: memref<1x32xf32, #tpu.memory_space<vmem>>, %arg6: memref<32x4xf32, #tpu.memory_space<vmem>>, %arg7: memref<1x4xf32, #tpu.memory_space<vmem>>, %arg8: memref<8x4xf32, #tpu.memory_space<vmem>>) attributes {dimension_semantics = [#tpu.dimension_semantics<parallel>], iteration_bounds = array<i64: 1>, scalar_prefetch = 0 : i64, scratch_operands = 0 : i64, tpu.core_type = #tpu.core_type<tc>, window_params = [{transform_indices = @transform_0, window_bounds = array<i64: 8, 16>}, {pipeline_mode = #tpu.pipeline_mode<synchronous>, transform_indices = @transform_1, window_bounds = array<i64: 16, 64>}, {pipeline_mode = #tpu.pipeline_mode<synchronous>, transform_indices = @transform_2, window_bounds = array<i64: 1, 64>}, {pipeline_mode = #tpu.pipeline_mode<synchronous>, transform_indices = @transform_3, window_bounds = array<i64: 64, 32>}, {pipeline_mode = #tpu.pipeline_mode<synchronous>, transform_indices = @transform_4, window_bounds = array<i64: 1, 32>}, {pipeline_mode = #tpu.pipeline_mode<synchronous>, transform_indices = @transform_5, window_bounds = array<i64: 32, 4>}, {pipeline_mode = #tpu.pipeline_mode<synchronous>, transform_indices = @transform_6, window_bounds = array<i64: 1, 4>}, {transform_indices = @transform_7, window_bounds = array<i64: 8, 4>}]} {
    %c0 = arith.constant 0 : index
    %c0_0 = arith.constant 0 : index
    %0 = vector.load %arg1[%c0, %c0_0] : memref<8x16xf32, #tpu.memory_space<vmem>>, vector<8x16xf32>
    %c0_1 = arith.constant 0 : index
    %c0_2 = arith.constant 0 : index
    %1 = vector.load %arg2[%c0_1, %c0_2] : memref<16x64xf32, #tpu.memory_space<vmem>>, vector<16x64xf32>
    %cst = arith.constant dense<0.000000e+00> : vector<8x64xf32>
    %2 = tpu.matmul %0, %1, %cst {dimension_numbers = #tpu.dot_dimension_numbers<[1], [0], [0], [1], [0, 0, 1, 1], [], []>} : vector<8x16xf32>, vector<16x64xf32>, vector<8x64xf32> -> vector<8x64xf32>
    %c0_3 = arith.constant 0 : index
    %c0_4 = arith.constant 0 : index
    %3 = vector.load %arg3[%c0_3, %c0_4] : memref<1x64xf32, #tpu.memory_space<vmem>>, vector<1x64xf32>
    %4 = vector.broadcast %3 : vector<1x64xf32> to vector<8x64xf32>
    %5 = arith.addf %2, %4 : vector<8x64xf32>
    %cst_5 = arith.constant 0.000000e+00 : f32
    %6 = vector.broadcast %cst_5 : f32 to vector<8x64xf32>
    %7 = arith.maximumf %5, %6 : vector<8x64xf32>
    %c0_6 = arith.constant 0 : index
    %c0_7 = arith.constant 0 : index
    %8 = vector.load %arg4[%c0_6, %c0_7] : memref<64x32xf32, #tpu.memory_space<vmem>>, vector<64x32xf32>
    %cst_8 = arith.constant dense<0.000000e+00> : vector<8x32xf32>
    %9 = tpu.matmul %7, %8, %cst_8 {dimension_numbers = #tpu.dot_dimension_numbers<[1], [0], [0], [1], [0, 0, 1, 1], [], []>} : vector<8x64xf32>, vector<64x32xf32>, vector<8x32xf32> -> vector<8x32xf32>
    %c0_9 = arith.constant 0 : index
    %c0_10 = arith.constant 0 : index
    %10 = vector.load %arg5[%c0_9, %c0_10] : memref<1x32xf32, #tpu.memory_space<vmem>>, vector<1x32xf32>
    %11 = vector.broadcast %10 : vector<1x32xf32> to vector<8x32xf32>
    %12 = arith.addf %9, %11 : vector<8x32xf32>
    %cst_11 = arith.constant 0.000000e+00 : f32
    %13 = vector.broadcast %cst_11 : f32 to vector<8x32xf32>
    %14 = arith.maximumf %12, %13 : vector<8x32xf32>
    %c0_12 = arith.constant 0 : index
    %c0_13 = arith.constant 0 : index
    %15 = vector.load %arg6[%c0_12, %c0_13] : memref<32x4xf32, #tpu.memory_space<vmem>>, vector<32x4xf32>
    %cst_14 = arith.constant dense<0.000000e+00> : vector<8x4xf32>
    %16 = tpu.matmul %14, %15, %cst_14 {dimension_numbers = #tpu.dot_dimension_numbers<[1], [0], [0], [1], [0, 0, 1, 1], [], []>} : vector<8x32xf32>, vector<32x4xf32>, vector<8x4xf32> -> vector<8x4xf32>
    %c0_15 = arith.constant 0 : index
    %c0_16 = arith.constant 0 : index
    %17 = vector.load %arg7[%c0_15, %c0_16] : memref<1x4xf32, #tpu.memory_space<vmem>>, vector<1x4xf32>
    %18 = vector.broadcast %17 : vector<1x4xf32> to vector<8x4xf32>
    %19 = arith.addf %16, %18 : vector<8x4xf32>
    %20 = math.tanh %19 : vector<8x4xf32>
    %c0_17 = arith.constant 0 : index
    %c0_18 = arith.constant 0 : index
    %21 = vector.load %arg8[%c0_17, %c0_18] : memref<8x4xf32, #tpu.memory_space<vmem>>, vector<8x4xf32>
    tpu.vector_store %arg8[%c0_17, %c0_18], %20 {strides = array<i32>} : memref<8x4xf32, #tpu.memory_space<vmem>>, vector<8x4xf32>,
    return
  }
  func.func @transform_0(%arg0: i32) -> (i32, i32) {
    %c0_i32 = arith.constant 0 : i32
    %c0_i32_0 = arith.constant 0 : i32
    return %arg0, %c0_i32 : i32, i32
  }
  func.func @transform_1(%arg0: i32) -> (i32, i32) {
    %c0_i32 = arith.constant 0 : i32
    %c0_i32_0 = arith.constant 0 : i32
    %c0_i32_1 = arith.constant 0 : i32
    return %c0_i32, %c0_i32_0 : i32, i32
  }
  func.func @transform_2(%arg0: i32) -> (i32, i32) {
    %c0_i32 = arith.constant 0 : i32
    %c0_i32_0 = arith.constant 0 : i32
    %c0_i32_1 = arith.constant 0 : i32
    return %c0_i32, %c0_i32_0 : i32, i32
  }
  func.func @transform_3(%arg0: i32) -> (i32, i32) {
    %c0_i32 = arith.constant 0 : i32
    %c0_i32_0 = arith.constant 0 : i32
    %c0_i32_1 = arith.constant 0 : i32
    return %c0_i32, %c0_i32_0 : i32, i32
  }
  func.func @transform_4(%arg0: i32) -> (i32, i32) {
    %c0_i32 = arith.constant 0 : i32
    %c0_i32_0 = arith.constant 0 : i32
    %c0_i32_1 = arith.constant 0 : i32
    return %c0_i32, %c0_i32_0 : i32, i32
  }
  func.func @transform_5(%arg0: i32) -> (i32, i32) {
    %c0_i32 = arith.constant 0 : i32
    %c0_i32_0 = arith.constant 0 : i32
    %c0_i32_1 = arith.constant 0 : i32
    return %c0_i32, %c0_i32_0 : i32, i32
  }
  func.func @transform_6(%arg0: i32) -> (i32, i32) {
    %c0_i32 = arith.constant 0 : i32
    %c0_i32_0 = arith.constant 0 : i32
    %c0_i32_1 = arith.constant 0 : i32
    return %c0_i32, %c0_i32_0 : i32, i32
  }
  func.func @transform_7(%arg0: i32) -> (i32, i32) {
    %c0_i32 = arith.constant 0 : i32
    %c0_i32_0 = arith.constant 0 : i32
    return %arg0, %c0_i32 : i32, i32
  }
}

</mosaic_0001>

<llo_original>
// kernel: actor_forward.1
$region0: #{actor_forward.1}
  #allocation0 [shape = 'u32[]', space=smem, size = 0x4, offset = 0x4, fixed_abs, tag = 'smem constant byte address 0x4 - core index']
  #allocation1 [shape = 'u32[72,128]{1,0:T(1,128)}', space=vmem, size = 0x9000, scoped, tag = 'internal scratch']
  %s0 = inlined_call_operand.vmem [shape: f32[8,16], index: 0, kind: input, shape index: {}]
  %s1 = inlined_call_operand.vmem [shape: f32[16,64], index: 1, kind: input, shape index: {}]
  %s2 = inlined_call_operand.vmem [shape: f32[1,64], index: 2, kind: input, shape index: {}]
  %s3 = inlined_call_operand.vmem [shape: f32[64,32], index: 3, kind: input, shape index: {}]
  %s4 = inlined_call_operand.vmem [shape: f32[1,32], index: 4, kind: input, shape index: {}]
  %s5 = inlined_call_operand.vmem [shape: f32[32,4], index: 5, kind: input, shape index: {}]
  %s6 = inlined_call_operand.vmem [shape: f32[1,4], index: 6, kind: input, shape index: {}]
  %s7 = inlined_call_operand.vmem [shape: f32[8,4], index: 7, kind: output, shape index: {}]
  %s8 = sld [smem:[#allocation0]]
  $region38: #{actor_forward.1} parent=0
    _
  %s10 = ssub.s32 1, %s8
  %s11 = scalar_select 0, %s10, %s8
  // Predicated region
  $region2: #{actor_forward.1} parent=0 // pred_check
    _
  $region3: #{actor_forward.1} parent=0 // pred_check_branch
    %13 = sbr.rel (0) target = $region5
  $region4: #{actor_forward.1} parent=0 // pred_region
    _
  $region5: #{actor_forward.1} parent=0 // pred_fallthru
    _
  // Predicated region
  $region6: #{actor_forward.1} parent=0 // pred_check
    _
  $region7: #{actor_forward.1} parent=0 // pred_check_branch
    %15 = sbr.rel (0) target = $region9
  $region8: #{actor_forward.1} parent=0 // pred_region
    _
  $region9: #{actor_forward.1} parent=0 // pred_fallthru
    _
  // Predicated region
  $region10: #{actor_forward.1} parent=0 // pred_check
    _
  $region11: #{actor_forward.1} parent=0 // pred_check_branch
    %17 = sbr.rel (0) target = $region13
  $region12: #{actor_forward.1} parent=0 // pred_region
    _
  $region13: #{actor_forward.1} parent=0 // pred_fallthru
    _
  // Predicated region
  $region14: #{actor_forward.1} parent=0 // pred_check
    _
  $region15: #{actor_forward.1} parent=0 // pred_check_branch
    %19 = sbr.rel (0) target = $region17
  $region16: #{actor_forward.1} parent=0 // pred_region
    _
  $region17: #{actor_forward.1} parent=0 // pred_fallthru
    _
  // Predicated region
  $region18: #{actor_forward.1} parent=0 // pred_check
    _
  $region19: #{actor_forward.1} parent=0 // pred_check_branch
    %21 = sbr.rel (0) target = $region21
  $region20: #{actor_forward.1} parent=0 // pred_region
    _
  $region21: #{actor_forward.1} parent=0 // pred_fallthru
    _
  // Predicated region
  $region22: #{actor_forward.1} parent=0 // pred_check
    _
  $region23: #{actor_forward.1} parent=0 // pred_check_branch
    %23 = sbr.rel (0) target = $region25
  $region24: #{actor_forward.1} parent=0 // pred_region
    _
  $region25: #{actor_forward.1} parent=0 // pred_fallthru
    _
  // Predicated region
  $region26: #{actor_forward.1} parent=0 // pred_check
    _
  $region27: #{actor_forward.1} parent=0 // pred_check_branch
    %25 = sbr.rel (0) target = $region29
  $region28: #{actor_forward.1} parent=0 // pred_region
    _
  $region29: #{actor_forward.1} parent=0 // pred_fallthru
    _
  %v26 = vld [vmem:[%s0] sm:$0xff]
  %v27 = vld [vmem:[%s1] sm:$0xff]
  %v28 = vld [vmem:[%s1 + $0x8] sm:$0xff]
  %v29 = vld [vmem:[%s2] sm:$0x1]
  %v31 = vperm.slane %v29, 0
  %vm33 = vcmask 130048
  %v35 = vsel %vm33, %v26, 0
  %37 = vmatpush.msra.mxu0 0.0
  %38 = vmatpush.msra.mxu0 0.0
  %39 = vmatpush.msra.mxu0 0.0
  %40 = vmatpush.msra.mxu0 0.0
  %41 = vmatpush.msra.mxu0 0.0
  %42 = vmatpush.msra.mxu0 0.0
  %43 = vmatpush.msra.mxu0 0.0
  %44 = vmatpush.msra.mxu0 0.0
  %45 = vmatpush.msra.mxu0 0.0
  %46 = vmatpush.msra.mxu0 0.0
  %47 = vmatpush.msra.mxu0 0.0
  %48 = vmatpush.msra.mxu0 0.0
  %49 = vmatpush.msra.mxu0 0.0
  %50 = vmatpush.msra.mxu0 0.0
  %51 = vmatpush.msra.mxu0 %v28
  %52 = vmatpush.msra.mxu0 %v27
  %53 = vmatmul.f32.gmra.mxu0 %v35
  %v54 = vpop.f32.mrf.mxu0
  %v55 = vadd.f32 %v31, %v54
  %56 = vdwg.mxu0
  %v57 = vmax.f32 %v55, 0.0
  %v58 = vld [vmem:[%s3] sm:$0xff]
  %v59 = vld [vmem:[%s3 + $0x8] sm:$0xff]
  %v60 = vld [vmem:[%s3 + $0x10] sm:$0xff]
  %v61 = vld [vmem:[%s3 + $0x18] sm:$0xff]
  %v62 = vld [vmem:[%s3 + $0x20] sm:$0xff]
  %v63 = vld [vmem:[%s3 + $0x28] sm:$0xff]
  %v64 = vld [vmem:[%s3 + $0x30] sm:$0xff]
  %v65 = vld [vmem:[%s3 + $0x38] sm:$0xff]
  %v66 = vld [vmem:[%s4] sm:$0x1]
  %v68 = vperm.slane %v66, 0
  %vm70 = vcmask 523264
  %v72 = vsel %vm70, %v57, 0
  %74 = vmatpush.msra.mxu0 0.0
  %75 = vmatpush.msra.mxu0 0.0
  %76 = vmatpush.msra.mxu0 0.0
  %77 = vmatpush.msra.mxu0 0.0
  %78 = vmatpush.msra.mxu0 0.0
  %79 = vmatpush.msra.mxu0 0.0
  %80 = vmatpush.msra.mxu0 0.0
  %81 = vmatpush.msra.mxu0 0.0
  %82 = vmatpush.msra.mxu0 %v65
  %83 = vmatpush.msra.mxu0 %v64
  %84 = vmatpush.msra.mxu0 %v63
  %85 = vmatpush.msra.mxu0 %v62
  %86 = vmatpush.msra.mxu0 %v61
  %87 = vmatpush.msra.mxu0 %v60
  %88 = vmatpush.msra.mxu0 %v59
  %89 = vmatpush.msra.mxu0 %v58
  %90 = vmatmul.f32.gmra.mxu0 %v72
  %v91 = vpop.f32.mrf.mxu0
  %v92 = vadd.f32 %v68, %v91
  %93 = vdwg.mxu0
  %v94 = vmax.f32 %v92, 0.0
  %v95 = vld [vmem:[%s5] sm:$0xff]
  %v96 = vld [vmem:[%s5 + $0x8] sm:$0xff]
  %v97 = vld [vmem:[%s5 + $0x10] sm:$0xff]
  %v98 = vld [vmem:[%s5 + $0x18] sm:$0xff]
  %v99 = vld [vmem:[%s6] sm:$0x1]
  %v101 = vperm.slane %v99, 0
  %vm103 = vcmask 261120
  %v105 = vsel %vm103, %v94, 0
  %107 = vmatpush.msra.mxu0 0.0
  %108 = vmatpush.msra.mxu0 0.0
  %109 = vmatpush.msra.mxu0 0.0
  %110 = vmatpush.msra.mxu0 0.0
  %111 = vmatpush.msra.mxu0 0.0
  %112 = vmatpush.msra.mxu0 0.0
  %113 = vmatpush.msra.mxu0 0.0
  %114 = vmatpush.msra.mxu0 0.0
  %115 = vmatpush.msra.mxu0 0.0
  %116 = vmatpush.msra.mxu0 0.0
  %117 = vmatpush.msra.mxu0 0.0
  %118 = vmatpush.msra.mxu0 0.0
  %119 = vmatpush.msra.mxu0 %v98
  %120 = vmatpush.msra.mxu0 %v97
  %121 = vmatpush.msra.mxu0 %v96
  %122 = vmatpush.msra.mxu0 %v95
  %123 = vmatmul.f32.gmra.mxu0 %v105
  %v124 = vpop.f32.mrf.mxu0
  %v125 = vadd.f32 %v101, %v124
  %126 = vdwg.mxu0
  %v127 = vtanh.pop %v125
  %vm128 = vcmask 31744
  %129 = vst.msk [vmem:[%s7] sm:$0xff] %vm128, %v127
  // Predicated region
  $region30: #{actor_forward.1} parent=0 // pred_check
    _
  $region31: #{actor_forward.1} parent=0 // pred_check_branch
    %131 = sbr.rel (0) target = $region33
  $region32: #{actor_forward.1} parent=0 // pred_region
    _
  $region33: #{actor_forward.1} parent=0 // pred_fallthru
    _
  // Predicated region
  $region34: #{actor_forward.1} parent=0 // pred_check
    _
  $region35: #{actor_forward.1} parent=0 // pred_check_branch
    %133 = sbr.rel (0) target = $region37
  $region36: #{actor_forward.1} parent=0 // pred_region
    _
  $region37: #{actor_forward.1} parent=0 // pred_fallthru
    _

</llo_original>
